<compile_context>
chip_gen: v7x
topology: tpu7x:2x2x1
jax: 0.10.0
libtpu: 0.0.40
codegen_flags: <defaults>
</compile_context>

<pallas_src>
import functools

import jax
import jax.numpy as jnp
from jax.experimental import pallas as pl
from jax.experimental.pallas import tpu as pltpu


def _round_up(v, m):
    return ((v + m - 1) // m) * m


def _largest_aligned_divisor(total, align, max_tile):
    """Largest tile that is a multiple of `align`, divides `total` exactly,
    and is <= max_tile.  `total` must already be a multiple of `align`."""
    n = total // align
    cap = max(1, min(n, max_tile // align))
    for d in range(cap, 0, -1):
        if n % d == 0:
            return d * align
    return align


def entity_layer_kernel(x_ref, wt_ref, h_ref, o_ref, acc_ref):
    """One (TM, TN) output tile; K is reduced along grid axis 2."""
    k = pl.program_id(2)

    # Initialize the f32 accumulator directly from the residual h (saves one
    # zero-fill + one full (TM, TN) add per output tile).
    @pl.when(k == 0)
    def _():
        acc_ref[...] = h_ref[...].astype(jnp.float32)

    # MXU matmul (bf16 inputs) with the f32 accumulator resident in VMEM
    # across the K loop.
    acc_ref[...] += jnp.dot(
        x_ref[...], wt_ref[...], preferred_element_type=jnp.float32
    )

    @pl.when(k == pl.num_programs(2) - 1)
    def _():
        # Cast + lane-dense store.
        o_ref[...] = acc_ref[...].astype(o_ref.dtype)


@functools.partial(jax.jit, static_argnames=("tm", "tn", "tk", "alias_h"))
def entity_layer(x, w_t, h, *, tm=512, tn=512, tk=1024, alias_h=False):
    """Pallas equivalent of EntityLayer.forward: x @ W^T + h.

    x:   (B, initial_size)            -- ideally already bf16 (input prep)
    w_t: (Kp, Np) pre-transposed, pre-padded to (8,128)-aligned dims, bf16
         (see init_entity_layer_params; no per-call transpose/pad/cast)
    h:   (B, layer_size)              -- residual; its dtype is the out dtype
    returns (B, layer_size) in h.dtype.
    """
    B, K = x.shape
    Kp, Np = w_t.shape
    Bh, N = h.shape
    assert Bh == B
    assert Kp == _round_up(K, 128), "w_t must be pre-padded to 128-aligned K"
    assert Np == _round_up(N, 128), "w_t must be pre-padded to 128-aligned N"
    out_dtype = h.dtype

    # Fallback cast (prefer casting x at input-prep time, outside jit).
    if x.dtype != w_t.dtype:
        x = x.astype(w_t.dtype)

    Bp = _round_up(B, 8)

    # Tiles: exact divisors of the (8,128)-aligned dims -> zero extra padding.
    TM = _largest_aligned_divisor(Bp, 8, tm)
    TK = _largest_aligned_divisor(Kp, 128, tk)
    tn_cap = tn
    if Bp // TM == 1 and Np >= 256:
        # Small batch: make sure the N ("parallel") axis has >= 2 programs so
        # both v7x TensorCores get work.
        tn_cap = max(128, min(tn, (Np // 2) // 128 * 128))
    TN = _largest_aligned_divisor(Np, 128, tn_cap)

    # Per-call activation padding only up to (8,128) alignment (zeros are
    # inert for the reduction; padded rows/cols are sliced off below).
    if (Bp, Kp) != (B, K):
        x = jnp.pad(x, ((0, Bp - B), (0, Kp - K)))
    if (Bp, Np) != (B, N):
        h = jnp.pad(h, ((0, Bp - B), (0, Np - N)))

    grid = (Bp // TM, Np // TN, Kp // TK)

    isz = lambda a: jnp.dtype(a.dtype).itemsize
    o_isz = jnp.dtype(out_dtype).itemsize
    # Tiled refetch: x is streamed once per N-tile, w_t once per M-tile.
    cost = pl.CostEstimate(
        flops=2 * Bp * Kp * Np,
        transcendentals=0,
        bytes_accessed=(
            isz(x) * Bp * Kp * (Np // TN)
            + isz(w_t) * Kp * Np * (Bp // TM)
            + isz(h) * Bp * Np
            + o_isz * Bp * Np
        ),
    )

    # Double-buffered working set (+ f32 accumulator), clamped so it is safe
    # on v7x's 64 MiB physical VMEM while still well above default scopes.
    vmem_est = (
        2 * (TM * TK * isz(x) + TK * TN * isz(w_t) + TM * TN * isz(h)
             + TM * TN * o_isz)
        + TM * TN * 4
    )
    vmem_limit = int(min(48 * 2**20, max(32 * 2**20, vmem_est + 4 * 2**20)))

    call_kwargs = {}
    if alias_h and h.dtype == out_dtype:
        # Result overwrites h's buffer (h must be dead after the call).
        call_kwargs["input_output_aliases"] = {2: 0}

    out = pl.pallas_call(
        entity_layer_kernel,
        out_shape=jax.ShapeDtypeStruct((Bp, Np), out_dtype),
        grid_spec=pltpu.PrefetchScalarGridSpec(
            num_scalar_prefetch=0,
            grid=grid,
            in_specs=[
                pl.BlockSpec((TM, TK), lambda i, j, k: (i, k)),
                pl.BlockSpec((TK, TN), lambda i, j, k: (k, j)),
                # h block index is constant over k -> resident, single DMA.
                pl.BlockSpec((TM, TN), lambda i, j, k: (i, j)),
            ],
            out_specs=pl.BlockSpec((TM, TN), lambda i, j, k: (i, j)),
            scratch_shapes=[pltpu.VMEM((TM, TN), jnp.float32)],
        ),
        compiler_params=pltpu.CompilerParams(
            # M/N parallel (megacore sharding on v7x), K reduction arbitrary.
            dimension_semantics=("parallel", "parallel", "arbitrary"),
            vmem_limit_bytes=vmem_limit,
        ),
        cost_estimate=cost,
        **call_kwargs,
    )(x, w_t, h)

    if (Bp, Np) != (B, N):
        out = out[:B, :N]
    return out


def init_entity_layer_params(key, initial_size, layer_size, gain=1.414,
                             dtype=jnp.bfloat16):
    """Xavier-normal init (gain=1.414) matching nn.init.xavier_normal_ on the
    (layer_size, initial_size) Linear weight, but:
      * stored pre-transposed as (initial_size, layer_size),
      * zero-padded once to (8,128)-aligned dims,
      * cast once to bf16,
    so the jitted forward never transposes, pads or casts the weight."""
    std = gain * (2.0 / (initial_size + layer_size)) ** 0.5
    w_t = std * jax.random.normal(
        key, (initial_size, layer_size), jnp.float32
    )
    Kp = _round_up(initial_size, 128)
    Np = _round_up(layer_size, 128)
    if (Kp, Np) != (initial_size, layer_size):
        w_t = jnp.pad(w_t, ((0, Kp - initial_size), (0, Np - layer_size)))
    return w_t.astype(dtype)


if __name__ == "__main__":
    # Small demo shapes consistent with the module (kernel-launch overhead
    # dominates here; the wins appear at production shapes).
    initial_size = 32   # input feature dim
    layer_size = 64     # output feature dim (padded to 128 lanes at init)
    batch = 8

    key = jax.random.PRNGKey(0)
    k_w, k_x, k_h = jax.random.split(key, 3)

    w_t = init_entity_layer_params(k_w, initial_size, layer_size)  # bf16, padded
    x = jax.random.normal(k_x, (batch, initial_size), jnp.float32)
    h = jax.random.normal(k_h, (batch, layer_size), jnp.float32)

    # Input prep: cast x to the compute dtype once, outside the jitted forward.
    x_bf = x.astype(jnp.bfloat16)

    out = entity_layer(x_bf, w_t, h)
    out = jax.block_until_ready(out)

    # Reference of the PyTorch forward (Linear(x) + h == x @ W^T + h), computed
    # in f32 from the same bf16-quantized inputs so it checks the kernel math.
    x_ref = x_bf.astype(jnp.float32)
    w_ref = w_t[:initial_size, :layer_size].astype(jnp.float32)
    ref = x_ref @ w_ref + h

    assert out.shape == (batch, layer_size)
    assert out.dtype == h.dtype
    assert jnp.allclose(out, ref, atol=1e-4, rtol=1e-4), (
        float(jnp.max(jnp.abs(out - ref)))
    )

    print("KERNEL_OK")
</pallas_src>

<mosaic_0001>
module attributes {stable_mosaic.version = 11 : i64} {
  func.func @entity_layer_kernel(%arg0: i32, %arg1: i32, %arg2: i32, %arg3: memref<8x128xbf16, #tpu.memory_space<vmem>>, %arg4: memref<128x128xbf16, #tpu.memory_space<vmem>>, %arg5: memref<8x128xf32, #tpu.memory_space<vmem>>, %arg6: memref<8x128xf32, #tpu.memory_space<vmem>>, %arg7: memref<8x128xf32, #tpu.memory_space<vmem>>) attributes {dimension_semantics = [#tpu.dimension_semantics<parallel>, #tpu.dimension_semantics<parallel>, #tpu.dimension_semantics<arbitrary>], iteration_bounds = array<i64: 1, 1, 1>, scalar_prefetch = 0 : i64, scratch_operands = 1 : i64, tpu.core_type = #tpu.core_type<tc>, window_params = [{transform_indices = @transform_0, window_bounds = array<i64: 8, 128>}, {transform_indices = @transform_1, window_bounds = array<i64: 128, 128>}, {transform_indices = @transform_2, window_bounds = array<i64: 8, 128>}, {transform_indices = @transform_3, window_bounds = array<i64: 8, 128>}]} {
    %c0_i32 = arith.constant 0 : i32
    %0 = arith.cmpi eq, %arg2, %c0_i32 : i32
    %1 = arith.extui %0 : i1 to i32
    %c0_i32_0 = arith.constant 0 : i32
    %2 = arith.cmpi ne, %1, %c0_i32_0 : i32
    scf.if %2 {
      %c0_10 = arith.constant 0 : index
      %c0_11 = arith.constant 0 : index
      %12 = vector.load %arg5[%c0_10, %c0_11] : memref<8x128xf32, #tpu.memory_space<vmem>>, vector<8x128xf32>
      %c0_12 = arith.constant 0 : index
      %c0_13 = arith.constant 0 : index
      %13 = vector.load %arg7[%c0_12, %c0_13] : memref<8x128xf32, #tpu.memory_space<vmem>>, vector<8x128xf32>
      tpu.vector_store %arg7[%c0_12, %c0_13], %12 {strides = array<i32>} : memref<8x128xf32, #tpu.memory_space<vmem>>, vector<8x128xf32>,
    } else {
    }
    %c0 = arith.constant 0 : index
    %c0_1 = arith.constant 0 : index
    %3 = vector.load %arg7[%c0, %c0_1] : memref<8x128xf32, #tpu.memory_space<vmem>>, vector<8x128xf32>
    %c0_2 = arith.constant 0 : index
    %c0_3 = arith.constant 0 : index
    %4 = vector.load %arg3[%c0_2, %c0_3] : memref<8x128xbf16, #tpu.memory_space<vmem>>, vector<8x128xbf16>
    %c0_4 = arith.constant 0 : index
    %c0_5 = arith.constant 0 : index
    %5 = vector.load %arg4[%c0_4, %c0_5] : memref<128x128xbf16, #tpu.memory_space<vmem>>, vector<128x128xbf16>
    %cst = arith.constant dense<0.000000e+00> : vector<8x128xf32>
    %6 = tpu.matmul %4, %5, %cst {dimension_numbers = #tpu.dot_dimension_numbers<[1], [0], [0], [1], [0, 0, 1, 1], [], []>} : vector<8x128xbf16>, vector<128x128xbf16>, vector<8x128xf32> -> vector<8x128xf32>
    %7 = arith.addf %3, %6 : vector<8x128xf32>
    %c0_6 = arith.constant 0 : index
    %c0_7 = arith.constant 0 : index
    %8 = vector.load %arg7[%c0_6, %c0_7] : memref<8x128xf32, #tpu.memory_space<vmem>>, vector<8x128xf32>
    tpu.vector_store %arg7[%c0_6, %c0_7], %7 {strides = array<i32>} : memref<8x128xf32, #tpu.memory_space<vmem>>, vector<8x128xf32>,
    %c0_i32_8 = arith.constant 0 : i32
    %9 = arith.cmpi eq, %arg2, %c0_i32_8 : i32
    %10 = arith.extui %9 : i1 to i32
    %c0_i32_9 = arith.constant 0 : i32
    %11 = arith.cmpi ne, %10, %c0_i32_9 : i32
    scf.if %11 {
      %c0_10 = arith.constant 0 : index
      %c0_11 = arith.constant 0 : index
      %12 = vector.load %arg7[%c0_10, %c0_11] : memref<8x128xf32, #tpu.memory_space<vmem>>, vector<8x128xf32>
      %c0_12 = arith.constant 0 : index
      %c0_13 = arith.constant 0 : index
      %13 = vector.load %arg6[%c0_12, %c0_13] : memref<8x128xf32, #tpu.memory_space<vmem>>, vector<8x128xf32>
      tpu.vector_store %arg6[%c0_12, %c0_13], %12 {strides = array<i32>} : memref<8x128xf32, #tpu.memory_space<vmem>>, vector<8x128xf32>,
    } else {
    }
    return
  }
  func.func @transform_0(%arg0: i32, %arg1: i32, %arg2: i32) -> (i32, i32) {
    %c0_i32 = arith.constant 0 : i32
    return %arg0, %arg2 : i32, i32
  }
  func.func @transform_1(%arg0: i32, %arg1: i32, %arg2: i32) -> (i32, i32) {
    %c0_i32 = arith.constant 0 : i32
    return %arg2, %arg1 : i32, i32
  }
  func.func @transform_2(%arg0: i32, %arg1: i32, %arg2: i32) -> (i32, i32) {
    %c0_i32 = arith.constant 0 : i32
    return %arg0, %arg1 : i32, i32
  }
  func.func @transform_3(%arg0: i32, %arg1: i32, %arg2: i32) -> (i32, i32) {
    %c0_i32 = arith.constant 0 : i32
    return %arg0, %arg1 : i32, i32
  }
}

</mosaic_0001>

<llo_original>
// kernel: entity_layer.1
$region0: #{entity_layer.1}
  #allocation0 [shape = 'u32[]', space=smem, size = 0x4, offset = 0x4, fixed_abs, tag = 'smem constant byte address 0x4 - core index']
  #allocation1 [shape = 'u32[144,128]{1,0:T(1,128)}', space=vmem, size = 0x12000, scoped, tag = 'internal scratch']
  #allocation2 [shape = 'f32[8,128]{1,0:T(8,128)}', space=vmem, size = 0x1000, scoped, tag = 'scratch operand']
  %s0 = inlined_call_operand.vmem [shape: bf16[8,128], index: 0, kind: input, shape index: {}]
  %s1 = inlined_call_operand.hbm [shape: bf16[128,128], index: 1, kind: input, shape index: {}]
  %s2 = inlined_call_operand.vmem [shape: f32[8,128], index: 2, kind: input, shape index: {}]
  %s3 = inlined_call_operand.hbm [shape: f32[8,128], index: 3, kind: output, shape index: {}]
  %s4 = sld [smem:[#allocation0]]
  $region34: #{entity_layer.1} parent=0
    _
  %s6 = ssub.s32 1, %s4
  %s7 = scalar_select 0, %s6, %s4
  $region1: #{entity_layer.1} parent=0
    #allocation3 [shape = 'u8[32768]{0}', space=vmem, size = 0x8000, scoped, tag = 'input window, operand 1, single buffered']
    #allocation4 [shape = 's32[1]{0}', space=sflag, size = 0x4, scoped, tag = 'scoped memory for entity_layer.1']
    #allocation5 [shape = 's32[1]{0}', space=sflag, size = 0x4, scoped, tag = 'scoped memory for entity_layer.1']
    #allocation6 [shape = 'u8[4096]{0}', space=vmem, size = 0x1000, scoped, tag = 'output window, operand 0, single buffered']
    %8 = vsyncpa [#allocation4], 0
    %9 = vsyncpa [#allocation5], 0
    // Predicated region
    $region2: #{entity_layer.1} parent=1 // pred_check
      _
    $region3: #{entity_layer.1} parent=1 // pred_check_branch
      %11 = sbr.rel (0) target = $region5
    $region4: #{entity_layer.1} parent=1 // pred_region
      _
    $region5: #{entity_layer.1} parent=1 // pred_fallthru
      _
    // Predicated region
    $region6: #{entity_layer.1} parent=1 // pred_check
      _
    $region7: #{entity_layer.1} parent=1 // pred_check_branch
      %13 = sbr.rel (0) target = $region9
    $region8: #{entity_layer.1} parent=1 // pred_region
      %s15 = ssub.s32 1024, 1024
      %16 = vsyncadd [#allocation4], %s15
      %s17 = sshll.u32 [#allocation3], 4
      %s18 = int_to_ptr.vmem [resolvable:$true] %s17
      %23 = dma.hbm_to_vmem [thread:$0]  %s1, 1024, %s18, [#allocation4], 64, 64, 4
    $region9: #{entity_layer.1} parent=1 // pred_fallthru
      _
    // Predicated region
    $region10: #{entity_layer.1} parent=1 // pred_check
      _
    $region11: #{entity_layer.1} parent=1 // pred_check_branch
      %25 = sbr.rel (0) target = $region13
    $region12: #{entity_layer.1} parent=1 // pred_region
      _
    $region13: #{entity_layer.1} parent=1 // pred_fallthru
      _
    // Predicated region
    $region14: #{entity_layer.1} parent=1 // pred_check
      _
    $region15: #{entity_layer.1} parent=1 // pred_check_branch
      %27 = sbr.rel (0) target = $region17
    $region16: #{entity_layer.1} parent=1 // pred_region
      %28 = dma.done [#allocation4], 1024
    $region17: #{entity_layer.1} parent=1 // pred_fallthru
      _
    %p30 = scmp.eq.s32.totalorder 0, 0
    // Predicated region
    $region18: #{entity_layer.1} parent=1 // pred_check
      %p31 = pneg %p30
    $region19: #{entity_layer.1} parent=1 // pred_check_branch
      %33 = sbr.rel (%p31) target = $region21
    $region20: #{entity_layer.1} parent=1 // pred_region
      %v34 = vld [vmem:[%s2] sm:$0xff]
      %35 = vst [vmem:[#allocation2] sm:$0xff] %v34
    $region21: #{entity_layer.1} parent=1 // pred_fallthru
      _
    %v36 = vld [vmem:[#allocation2] sm:$0xff]
    %v37 = vld [vmem:[%s0] sm:$0xf]
    %v38 = vld [vmem:[#allocation3] sm:$0xf]
    %v39 = vld [vmem:[#allocation3 + $0x4] sm:$0xf]
    %v40 = vld [vmem:[#allocation3 + $0x8] sm:$0xf]
    %v41 = vld [vmem:[#allocation3 + $0xc] sm:$0xf]
    %v42 = vld [vmem:[#allocation3 + $0x10] sm:$0xf]
    %v43 = vld [vmem:[#allocation3 + $0x14] sm:$0xf]
    %v44 = vld [vmem:[#allocation3 + $0x18] sm:$0xf]
    %v45 = vld [vmem:[#allocation3 + $0x1c] sm:$0xf]
    %v46 = vld [vmem:[#allocation3 + $0x20] sm:$0xf]
    %v47 = vld [vmem:[#allocation3 + $0x24] sm:$0xf]
    %v48 = vld [vmem:[#allocation3 + $0x28] sm:$0xf]
    %v49 = vld [vmem:[#allocation3 + $0x2c] sm:$0xf]
    %v50 = vld [vmem:[#allocation3 + $0x30] sm:$0xf]
    %v51 = vld [vmem:[#allocation3 + $0x34] sm:$0xf]
    %v52 = vld [vmem:[#allocation3 + $0x38] sm:$0xf]
    %v53 = vld [vmem:[#allocation3 + $0x3c] sm:$0xf]
    %v70 = vunpack.c.l.b16 %v38
    %v71 = vunpack.c.l.b16 %v39
    %v72 = vunpack.c.l.b16 %v40
    %v73 = vunpack.c.l.b16 %v41
    %v74 = vunpack.c.l.b16 %v42
    %v75 = vunpack.c.l.b16 %v43
    %v76 = vunpack.c.l.b16 %v44
    %v77 = vunpack.c.l.b16 %v45
    %v78 = vunpack.c.l.b16 %v46
    %v79 = vunpack.c.l.b16 %v47
    %v80 = vunpack.c.l.b16 %v48
    %v81 = vunpack.c.l.b16 %v49
    %v82 = vunpack.c.l.b16 %v50
    %v83 = vunpack.c.l.b16 %v51
    %v84 = vunpack.c.l.b16 %v52
    %v85 = vunpack.c.l.b16 %v53
    %v86 = vpack.c.b16 %v71, %v70
    %v87 = vpack.c.b16 %v73, %v72
    %v88 = vpack.c.b16 %v75, %v74
    %v89 = vpack.c.b16 %v77, %v76
    %v90 = vpack.c.b16 %v79, %v78
    %v91 = vpack.c.b16 %v81, %v80
    %v92 = vpack.c.b16 %v83, %v82
    %v93 = vpack.c.b16 %v85, %v84
    %102 = vmatprep.subr.bf16.mxu0 0
    %103 = vmatpush1.bf16.msra.mxu0 %v86
    %104 = vmatprep.subr.bf16.mxu0 0
    %105 = vmatpush1.bf16.msra.mxu0 %v87
    %106 = vmatprep.subr.bf16.mxu0 0
    %107 = vmatpush1.bf16.msra.mxu0 %v88
    %108 = vmatprep.subr.bf16.mxu0 0
    %109 = vmatpush1.bf16.msra.mxu0 %v89
    %110 = vmatprep.subr.bf16.mxu0 0
    %111 = vmatpush1.bf16.msra.mxu0 %v90
    %112 = vmatprep.subr.bf16.mxu0 0
    %113 = vmatpush1.bf16.msra.mxu0 %v91
    %114 = vmatprep.subr.bf16.mxu0 0
    %115 = vmatpush1.bf16.msra.mxu0 %v92
    %116 = vmatprep.subr.bf16.mxu0 0
    %117 = vmatpush1.bf16.msra.mxu0 %v93
    %118 = vmatprep.subr.bf16.mxu0 0
    %119 = vmatpush1.bf16.msra.mxu0 0
    %120 = vmatprep.subr.bf16.mxu0 0
    %121 = vmatpush1.bf16.msra.mxu0 0
    %122 = vmatprep.subr.bf16.mxu0 0
    %123 = vmatpush1.bf16.msra.mxu0 0
    %124 = vmatprep.subr.bf16.mxu0 0
    %125 = vmatpush1.bf16.msra.mxu0 0
    %126 = vmatprep.subr.bf16.mxu0 0
    %127 = vmatpush1.bf16.msra.mxu0 0
    %128 = vmatprep.subr.bf16.mxu0 0
    %129 = vmatpush1.bf16.msra.mxu0 0
    %130 = vmatprep.subr.bf16.mxu0 0
    %131 = vmatpush1.bf16.msra.mxu0 0
    %132 = vmatprep.subr.bf16.mxu0 0
    %133 = vmatpush1.bf16.msra.mxu0 0
    %134 = vmatprep.mubr.bf16.mxu0 0
    %135 = vmatmul.mubr.bf16.gmra.mrb[0].mxu0 %v37
    %v136 = vpop.f32.mrb[0].mxu0
    %v137 = vadd.f32 0.0, %v136
    %v138 = vpop.f32.mrb[0].mxu0
    %v139 = vpop.f32.mrb[0].mxu0
    %v140 = vpop.f32.mrb[0].mxu0
    %141 = vdwg.mxu0
    %v142 = vadd.f32 %v36, %v137
    %143 = vst [vmem:[#allocation2] sm:$0xff] %v142
    // Predicated region
    $region22: #{entity_layer.1} parent=1 // pred_check
      %p144 = pneg %p30
    $region23: #{entity_layer.1} parent=1 // pred_check_branch
      %146 = sbr.rel (%p144) target = $region25
    $region24: #{entity_layer.1} parent=1 // pred_region
      %v147 = vld [vmem:[#allocation2] sm:$0xff]
      %148 = vst [vmem:[#allocation6] sm:$0xff] %v147
    $region25: #{entity_layer.1} parent=1 // pred_fallthru
      _
    // Predicated region
    $region26: #{entity_layer.1} parent=1 // pred_check
      _
    $region27: #{entity_layer.1} parent=1 // pred_check_branch
      %150 = sbr.rel (0) target = $region29
    $region28: #{entity_layer.1} parent=1 // pred_region
      %s152 = ssub.s32 128, 128
      %153 = vsyncadd [#allocation5], %s152
      %s155 = sshll.u32 [#allocation6], 4
      %s156 = int_to_ptr.vmem [resolvable:$true] %s155
      %158 = dma.vmem_to_hbm [thread:$0]  %s156, 128, %s3, [#allocation5]
    $region29: #{entity_layer.1} parent=1 // pred_fallthru
      _
    // Predicated region
    $region30: #{entity_layer.1} parent=1 // pred_check
      _
    $region31: #{entity_layer.1} parent=1 // pred_check_branch
      %160 = sbr.rel (0) target = $region33
    $region32: #{entity_layer.1} parent=1 // pred_region
      %161 = dma.done [#allocation5], 128
    $region33: #{entity_layer.1} parent=1 // pred_fallthru
      _
    %162 = vsyncpa [#allocation4], 1
    %163 = vsyncpa [#allocation5], 1

</llo_original>
